<compile_context>
chip_gen: v7x
topology: tpu7x:2x2x1
jax: 0.10.0
libtpu: 0.0.40
codegen_flags: <defaults>
</compile_context>

<pallas_src>
import functools
import math

import jax
import jax.numpy as jnp
from jax.experimental import pallas as pl
from jax.experimental.pallas import tpu as pltpu

_LANES = 512           # lane-dense last dim (multiple of 128)
_MAX_TILE_ROWS = 1024  # 1024 x 512 f32 tile ~= 2 MiB; multiple of 8 sublanes


def _self_tanh_kernel(x_ref, o_ref, *, v, training):
    x = x_ref[...]
    if training:
        xf = x.astype(jnp.float32)
        if v != 1.0:
            xf = xf * v
        o_ref[...] = jnp.tanh(xf).astype(o_ref.dtype)
    else:
        o_ref[...] = jnp.sign(x)


def self_tanh(x, v=1.0, is_training=True):
    """SelfTanh forward: tanh(v*x) in training, sign(x) in eval.

    Preserves the input's shape and dtype.
    """
    orig_shape = x.shape
    total = math.prod(orig_shape)

    # Flatten to a lane-dense 2D slab (rows, 512), padding the tail.
    flat = x.reshape(-1)
    rows = pl.cdiv(total, _LANES)
    if rows <= _MAX_TILE_ROWS:
        tile_rows = rows                      # single block == full array dims
    else:
        tile_rows = _MAX_TILE_ROWS            # multiple of 8 -> (8,128) rule OK
        rows = tile_rows * pl.cdiv(rows, tile_rows)
    padded = rows * _LANES
    if padded != total:
        flat = jnp.pad(flat, (0, padded - total))
    x2 = flat.reshape(rows, _LANES)

    kernel = functools.partial(
        _self_tanh_kernel, v=float(v), training=bool(is_training))

    out2 = pl.pallas_call(
        kernel,
        out_shape=jax.ShapeDtypeStruct(x2.shape, x.dtype),
        grid=(rows // tile_rows,),
        in_specs=[pl.BlockSpec((tile_rows, _LANES), lambda i: (i, 0))],
        out_specs=pl.BlockSpec((tile_rows, _LANES), lambda i: (i, 0)),
        compiler_params=pltpu.CompilerParams(
            dimension_semantics=("parallel",),     # lets v7x use both TCs
            vmem_limit_bytes=32 * 1024 * 1024,     # explicit, safe on v5e/v6e/v7x
        ),
    )(x2)

    out = out2.reshape(-1)
    if padded != total:
        out = out[:total]
    return out.reshape(orig_shape)


def _reference(x, v=1.0, is_training=True):
    if is_training:
        return jnp.tanh(v * x.astype(jnp.float32)).astype(x.dtype)
    return jnp.sign(x)


if __name__ == "__main__":
    key = jax.random.PRNGKey(0)
    # small NCHW activation consistent with the module's typical use
    x = jax.random.normal(key, (2, 4, 16, 16), dtype=jnp.float32) * 2.0

    # default state after __init__: v = 1, is_training = True
    out_train = jax.block_until_ready(self_tanh(x, v=1.0, is_training=True))
    ref_train = _reference(x, v=1.0, is_training=True)

    # eval mode after set_value(v, False): sign(x)
    out_eval = jax.block_until_ready(self_tanh(x, v=1.0, is_training=False))
    ref_eval = _reference(x, v=1.0, is_training=False)

    assert out_train.shape == x.shape and out_train.dtype == x.dtype
    assert jnp.allclose(out_train, ref_train, atol=1e-5)
    assert out_eval.shape == x.shape and out_eval.dtype == x.dtype
    assert jnp.allclose(out_eval, ref_eval, atol=1e-6)

    # set_value(0.5, True) with bf16 input: dtype must be preserved (native I/O)
    xb = x.astype(jnp.bfloat16)
    out_b = jax.block_until_ready(self_tanh(xb, v=0.5, is_training=True))
    ref_b = _reference(xb, v=0.5, is_training=True)
    assert out_b.shape == xb.shape and out_b.dtype == jnp.bfloat16
    assert jnp.allclose(out_b.astype(jnp.float32), ref_b.astype(jnp.float32),
                        atol=2e-2)

    print("KERNEL_OK")
</pallas_src>

<mosaic_0001>
module attributes {stable_mosaic.version = 11 : i64} {
  func.func @_self_tanh_kernel(%arg0: i32, %arg1: memref<4x512xf32, #tpu.memory_space<vmem>>, %arg2: memref<4x512xf32, #tpu.memory_space<vmem>>) attributes {dimension_semantics = [#tpu.dimension_semantics<parallel>], iteration_bounds = array<i64: 1>, scalar_prefetch = 0 : i64, scratch_operands = 0 : i64, tpu.core_type = #tpu.core_type<tc>, window_params = [{transform_indices = @transform_0, window_bounds = array<i64: 4, 512>}, {transform_indices = @transform_1, window_bounds = array<i64: 4, 512>}]} {
    %c0 = arith.constant 0 : index
    %c0_0 = arith.constant 0 : index
    %0 = vector.load %arg1[%c0, %c0_0] : memref<4x512xf32, #tpu.memory_space<vmem>>, vector<4x512xf32>
    %1 = math.tanh %0 : vector<4x512xf32>
    %c0_1 = arith.constant 0 : index
    %c0_2 = arith.constant 0 : index
    %2 = vector.load %arg2[%c0_1, %c0_2] : memref<4x512xf32, #tpu.memory_space<vmem>>, vector<4x512xf32>
    tpu.vector_store %arg2[%c0_1, %c0_2], %1 {strides = array<i32>} : memref<4x512xf32, #tpu.memory_space<vmem>>, vector<4x512xf32>,
    return
  }
  func.func @transform_0(%arg0: i32) -> (i32, i32) {
    %c0_i32 = arith.constant 0 : i32
    %c0_i32_0 = arith.constant 0 : i32
    return %arg0, %c0_i32 : i32, i32
  }
  func.func @transform_1(%arg0: i32) -> (i32, i32) {
    %c0_i32 = arith.constant 0 : i32
    %c0_i32_0 = arith.constant 0 : i32
    return %arg0, %c0_i32 : i32, i32
  }
}

</mosaic_0001>

<llo_original>
// kernel: tpu_custom_call.1
$region0: #{tpu_custom_call.1}
  #allocation0 [shape = 'u32[]', space=smem, size = 0x4, offset = 0x4, fixed_abs, tag = 'smem constant byte address 0x4 - core index']
  #allocation1 [shape = 'u32[144,128]{1,0:T(1,128)}', space=vmem, size = 0x12000, scoped, tag = 'internal scratch']
  %s0 = inlined_call_operand.hbm [shape: f32[4,512], index: 0, kind: input, shape index: {}]
  %s1 = inlined_call_operand.hbm [shape: f32[4,512], index: 1, kind: output, shape index: {}]
  %s2 = sld [smem:[#allocation0]]
  $region18: #{tpu_custom_call.1} parent=0
    _
  %s4 = ssub.s32 1, %s2
  %s5 = scalar_select 0, %s4, %s2
  $region1: #{tpu_custom_call.1} parent=0
    #allocation2 [shape = 'u8[8192]{0}', space=vmem, size = 0x2000, scoped, tag = 'input window, operand 0, single buffered']
    #allocation3 [shape = 's32[1]{0}', space=sflag, size = 0x4, scoped, tag = 'scoped memory for tpu_custom_call.1']
    #allocation4 [shape = 's32[1]{0}', space=sflag, size = 0x4, scoped, tag = 'scoped memory for tpu_custom_call.1']
    #allocation5 [shape = 'u8[8192]{0}', space=vmem, size = 0x2000, scoped, tag = 'output window, operand 0, single buffered']
    %6 = vsyncpa [#allocation3], 0
    %7 = vsyncpa [#allocation4], 0
    // Predicated region
    $region2: #{tpu_custom_call.1} parent=1 // pred_check
      _
    $region3: #{tpu_custom_call.1} parent=1 // pred_check_branch
      %9 = sbr.rel (0) target = $region5
    $region4: #{tpu_custom_call.1} parent=1 // pred_region
      %s11 = ssub.s32 256, 256
      %12 = vsyncadd [#allocation3], %s11
      %s14 = sshll.u32 [#allocation2], 4
      %s15 = int_to_ptr.vmem [resolvable:$true] %s14
      %17 = dma.hbm_to_vmem [thread:$0]  %s0, 256, %s15, [#allocation3]
    $region5: #{tpu_custom_call.1} parent=1 // pred_fallthru
      _
    // Predicated region
    $region6: #{tpu_custom_call.1} parent=1 // pred_check
      _
    $region7: #{tpu_custom_call.1} parent=1 // pred_check_branch
      %19 = sbr.rel (0) target = $region9
    $region8: #{tpu_custom_call.1} parent=1 // pred_region
      %20 = dma.done [#allocation3], 256
    $region9: #{tpu_custom_call.1} parent=1 // pred_fallthru
      _
    %v21 = vld [vmem:[#allocation2] sm:$0xff]
    %v22 = vld [vmem:[#allocation2 + $0x8] sm:$0xff]
    %v23 = vtanh.pop %v21
    %v24 = vtanh.pop %v22
    %25 = vst [vmem:[#allocation5] sm:$0xff] %v23
    %26 = vst [vmem:[#allocation5 + $0x8] sm:$0xff] %v24
    // Predicated region
    $region10: #{tpu_custom_call.1} parent=1 // pred_check
      _
    $region11: #{tpu_custom_call.1} parent=1 // pred_check_branch
      %28 = sbr.rel (0) target = $region13
    $region12: #{tpu_custom_call.1} parent=1 // pred_region
      %s30 = ssub.s32 256, 256
      %31 = vsyncadd [#allocation4], %s30
      %s33 = sshll.u32 [#allocation5], 4
      %s34 = int_to_ptr.vmem [resolvable:$true] %s33
      %36 = dma.vmem_to_hbm [thread:$0]  %s34, 256, %s1, [#allocation4]
    $region13: #{tpu_custom_call.1} parent=1 // pred_fallthru
      _
    // Predicated region
    $region14: #{tpu_custom_call.1} parent=1 // pred_check
      _
    $region15: #{tpu_custom_call.1} parent=1 // pred_check_branch
      %38 = sbr.rel (0) target = $region17
    $region16: #{tpu_custom_call.1} parent=1 // pred_region
      %39 = dma.done [#allocation4], 256
    $region17: #{tpu_custom_call.1} parent=1 // pred_fallthru
      _
    %40 = vsyncpa [#allocation3], 1
    %41 = vsyncpa [#allocation4], 1

</llo_original>
